<compile_context>
chip_gen: v6e
topology: v6e:2x2x1
jax: 0.10.0
libtpu: 0.0.40
codegen_flags: <defaults>
</compile_context>

<pallas_src>
import jax
import jax.numpy as jnp
from jax import lax
from jax.experimental import pallas as pl
from jax.experimental.pallas import tpu as pltpu

BN_EPS = 1e-5


def _router_kernel(x_ref, w_ref, o_ref, acc_ref):
    # x_ref: (B, tk), w_ref: (E_blk, tk), o_ref: (B, E_blk) f32, acc_ref: (B, E_blk) f32
    k = pl.program_id(1)

    @pl.when(k == 0)
    def _():
        acc_ref[...] = jnp.zeros_like(acc_ref)

    # Linear (no bias): contract over the last dim of BOTH operands so no
    # [D, E] transpose is materialized; the MXU is fed directly. f32 accumulate.
    acc_ref[...] += lax.dot_general(
        x_ref[...], w_ref[...],
        dimension_numbers=(((1,), (1,)), ((), ())),
        preferred_element_type=jnp.float32)

    @pl.when(k == pl.num_programs(1) - 1)
    def _():
        logits = acc_ref[...]
        # BatchNorm1d(affine=False), training-mode normalization: per-column
        # batch mean, *biased* variance, eps=1e-5.  The full batch is resident
        # in this block, so the statistics are exact.  Epilogue stays f32
        # (v5e's VPU/EUP have no bf16 path).
        mean = jnp.mean(logits, axis=0, keepdims=True)
        var = jnp.mean((logits - mean) ** 2, axis=0, keepdims=True)
        o_ref[...] = ((logits - mean) * lax.rsqrt(var + BN_EPS)).astype(o_ref.dtype)


@jax.jit
def _router_pallas(x, weight):
    B, D = x.shape
    E, Dw = weight.shape
    assert D == Dw, f"indim mismatch: got {D}, weight expects {Dw}"

    # Reduction tile along D: big enough to approach the HBM roofline, small
    # enough that double-buffered (B,tk)+(E_blk,tk) blocks + the (B,E_blk)
    # accumulator stay far under even v7x's 64 MiB VMEM.
    TK = min(512, ((D + 127) // 128) * 128)
    D_pad = pl.cdiv(D, TK) * TK
    if D_pad != D:
        # Zero padding along D contributes nothing to the contraction.
        x = jnp.pad(x, ((0, 0), (0, D_pad - D)))
        weight = jnp.pad(weight, ((0, 0), (0, D_pad - D)))

    # Tile experts in lane-dense 128-wide blocks when E allows it (unmasked
    # vst + a parallel grid axis for megacore / 2-TC sharding); otherwise keep
    # the full (small) extent as a single block.
    E_blk = 128 if (E % 128 == 0) else E
    grid = (E // E_blk, D_pad // TK)

    return pl.pallas_call(
        _router_kernel,
        out_shape=jax.ShapeDtypeStruct((B, E), jnp.float32),
        grid_spec=pltpu.PrefetchScalarGridSpec(
            num_scalar_prefetch=0,
            grid=grid,
            in_specs=[
                pl.BlockSpec((B, TK), lambda e, k: (0, k)),       # activations
                pl.BlockSpec((E_blk, TK), lambda e, k: (e, k)),   # Linear weight [E, D]
            ],
            out_specs=pl.BlockSpec((B, E_blk), lambda e, k: (0, e)),
            scratch_shapes=[pltpu.VMEM((B, E_blk), jnp.float32)],
        ),
        compiler_params=pltpu.CompilerParams(
            dimension_semantics=("parallel", "arbitrary"),
            vmem_limit_bytes=32 * 1024 * 1024,
        ),
    )(x, weight)


def neko_feature_based_static_router_forward(feature, weight, expert_names):
    """feature: [B, C, H, W] (or [B, D]); weight: [E, D]. Returns (scores[B,E], expert_names)."""
    B = feature.shape[0]
    # Row-major flatten, identical element ordering to torch .reshape([B, -1]).
    # No dtype upcast: stream the native dtype (bf16 halves HBM traffic);
    # the matmul still accumulates in f32 inside the kernel.
    x = feature.reshape(B, -1)
    E, D = weight.shape
    assert x.shape[1] == D, f"indim mismatch: got {x.shape[1]}, weight expects {D}"
    if weight.dtype != x.dtype:
        weight = weight.astype(x.dtype)
    scores = _router_pallas(x, weight)
    return scores, expert_names


def _reference(feature, weight):
    B = feature.shape[0]
    x = feature.reshape(B, -1).astype(jnp.float32)
    logits = x @ weight.astype(jnp.float32).T
    mean = jnp.mean(logits, axis=0, keepdims=True)
    var = jnp.mean((logits - mean) ** 2, axis=0, keepdims=True)
    return (logits - mean) / jnp.sqrt(var + BN_EPS)


if __name__ == "__main__":
    # Small shapes consistent with the module: feature [B, C, H, W], indim = C*H*W.
    B, C, H, W = 2, 4, 16, 16
    indim = C * H * W  # 1024
    expert_names = ["expert_a", "expert_b", "expert_c", "expert_d"]
    E = len(expert_names)

    key = jax.random.PRNGKey(0)
    k_feat, k_w = jax.random.split(key)
    feature = jax.random.normal(k_feat, (B, C, H, W), dtype=jnp.float32)
    # Deterministic Linear weight init (torch-like uniform(-1/sqrt(indim), 1/sqrt(indim))).
    bound = 1.0 / (indim ** 0.5)
    weight = jax.random.uniform(k_w, (E, indim), dtype=jnp.float32,
                                minval=-bound, maxval=bound)

    scores, names = neko_feature_based_static_router_forward(feature, weight, expert_names)
    scores = jax.block_until_ready(scores)

    ref = _reference(feature, weight)
    assert scores.shape == (B, E)
    assert names == expert_names
    assert jnp.allclose(scores, ref, atol=1e-4, rtol=1e-4), "mismatch vs JAX reference"

    print("KERNEL_OK")
</pallas_src>

<mosaic_0001>
module attributes {stable_mosaic.version = 11 : i64} {
  func.func @_router_kernel(%arg0: i32, %arg1: i32, %arg2: memref<2x512xf32, #tpu.memory_space<vmem>>, %arg3: memref<4x512xf32, #tpu.memory_space<vmem>>, %arg4: memref<2x4xf32, #tpu.memory_space<vmem>>, %arg5: memref<2x4xf32, #tpu.memory_space<vmem>>) attributes {dimension_semantics = [#tpu.dimension_semantics<parallel>, #tpu.dimension_semantics<arbitrary>], iteration_bounds = array<i64: 1, 2>, scalar_prefetch = 0 : i64, scratch_operands = 1 : i64, tpu.core_type = #tpu.core_type<tc>, window_params = [{transform_indices = @transform_0, window_bounds = array<i64: 2, 512>}, {transform_indices = @transform_1, window_bounds = array<i64: 4, 512>}, {transform_indices = @transform_2, window_bounds = array<i64: 2, 4>}]} {
    %c0_i32 = arith.constant 0 : i32
    %0 = arith.cmpi eq, %arg1, %c0_i32 : i32
    %1 = arith.extui %0 : i1 to i32
    %c0_i32_0 = arith.constant 0 : i32
    %2 = arith.cmpi ne, %1, %c0_i32_0 : i32
    scf.if %2 {
      %cst_9 = arith.constant 0.000000e+00 : f32
      %12 = vector.broadcast %cst_9 : f32 to vector<2x4xf32>
      %c0_10 = arith.constant 0 : index
      %c0_11 = arith.constant 0 : index
      %13 = vector.load %arg5[%c0_10, %c0_11] : memref<2x4xf32, #tpu.memory_space<vmem>>, vector<2x4xf32>
      tpu.vector_store %arg5[%c0_10, %c0_11], %12 {strides = array<i32>} : memref<2x4xf32, #tpu.memory_space<vmem>>, vector<2x4xf32>,
    } else {
    }
    %c0 = arith.constant 0 : index
    %c0_1 = arith.constant 0 : index
    %3 = vector.load %arg5[%c0, %c0_1] : memref<2x4xf32, #tpu.memory_space<vmem>>, vector<2x4xf32>
    %c0_2 = arith.constant 0 : index
    %c0_3 = arith.constant 0 : index
    %4 = vector.load %arg2[%c0_2, %c0_3] : memref<2x512xf32, #tpu.memory_space<vmem>>, vector<2x512xf32>
    %c0_4 = arith.constant 0 : index
    %c0_5 = arith.constant 0 : index
    %5 = vector.load %arg3[%c0_4, %c0_5] : memref<4x512xf32, #tpu.memory_space<vmem>>, vector<4x512xf32>
    %cst = arith.constant dense<0.000000e+00> : vector<2x4xf32>
    %6 = tpu.matmul %4, %5, %cst {dimension_numbers = #tpu.dot_dimension_numbers<[1], [1], [0], [0], [0, 0, 1, 0], [], []>} : vector<2x512xf32>, vector<4x512xf32>, vector<2x4xf32> -> vector<2x4xf32>
    %7 = arith.addf %3, %6 : vector<2x4xf32>
    %c0_6 = arith.constant 0 : index
    %c0_7 = arith.constant 0 : index
    %8 = vector.load %arg5[%c0_6, %c0_7] : memref<2x4xf32, #tpu.memory_space<vmem>>, vector<2x4xf32>
    tpu.vector_store %arg5[%c0_6, %c0_7], %7 {strides = array<i32>} : memref<2x4xf32, #tpu.memory_space<vmem>>, vector<2x4xf32>,
    %c1_i32 = arith.constant 1 : i32
    %9 = arith.cmpi eq, %arg1, %c1_i32 : i32
    %10 = arith.extui %9 : i1 to i32
    %c0_i32_8 = arith.constant 0 : i32
    %11 = arith.cmpi ne, %10, %c0_i32_8 : i32
    scf.if %11 {
      %c0_9 = arith.constant 0 : index
      %c0_10 = arith.constant 0 : index
      %12 = vector.load %arg5[%c0_9, %c0_10] : memref<2x4xf32, #tpu.memory_space<vmem>>, vector<2x4xf32>
      %cst_11 = arith.constant dense<0.000000e+00> : vector<4xf32>
      %13 = vector.multi_reduction <add>, %12, %cst_11 [0] : vector<2x4xf32> to vector<4xf32>
      %14 = vector.shape_cast %13 : vector<4xf32> to vector<1x4xf32>
      %cst_12 = arith.constant 2.000000e+00 : f32
      %15 = vector.broadcast %cst_12 : f32 to vector<1x4xf32>
      %16 = arith.divf %14, %15 : vector<1x4xf32>
      %17 = vector.broadcast %16 : vector<1x4xf32> to vector<2x4xf32>
      %18 = arith.subf %12, %17 : vector<2x4xf32>
      %19 = arith.mulf %18, %18 : vector<2x4xf32>
      %cst_13 = arith.constant dense<0.000000e+00> : vector<4xf32>
      %20 = vector.multi_reduction <add>, %19, %cst_13 [0] : vector<2x4xf32> to vector<4xf32>
      %21 = vector.shape_cast %20 : vector<4xf32> to vector<1x4xf32>
      %cst_14 = arith.constant 2.000000e+00 : f32
      %22 = vector.broadcast %cst_14 : f32 to vector<1x4xf32>
      %23 = arith.divf %21, %22 : vector<1x4xf32>
      %24 = vector.broadcast %16 : vector<1x4xf32> to vector<2x4xf32>
      %25 = arith.subf %12, %24 : vector<2x4xf32>
      %cst_15 = arith.constant 9.99999974E-6 : f32
      %26 = vector.broadcast %cst_15 : f32 to vector<1x4xf32>
      %27 = arith.addf %23, %26 : vector<1x4xf32>
      %28 = math.rsqrt %27 : vector<1x4xf32>
      %29 = vector.broadcast %28 : vector<1x4xf32> to vector<2x4xf32>
      %30 = arith.mulf %25, %29 : vector<2x4xf32>
      %c0_16 = arith.constant 0 : index
      %c0_17 = arith.constant 0 : index
      %31 = vector.load %arg4[%c0_16, %c0_17] : memref<2x4xf32, #tpu.memory_space<vmem>>, vector<2x4xf32>
      tpu.vector_store %arg4[%c0_16, %c0_17], %30 {strides = array<i32>} : memref<2x4xf32, #tpu.memory_space<vmem>>, vector<2x4xf32>,
    } else {
    }
    return
  }
  func.func @transform_0(%arg0: i32, %arg1: i32) -> (i32, i32) {
    %c0_i32 = arith.constant 0 : i32
    %c0_i32_0 = arith.constant 0 : i32
    return %c0_i32, %arg1 : i32, i32
  }
  func.func @transform_1(%arg0: i32, %arg1: i32) -> (i32, i32) {
    %c0_i32 = arith.constant 0 : i32
    return %arg0, %arg1 : i32, i32
  }
  func.func @transform_2(%arg0: i32, %arg1: i32) -> (i32, i32) {
    %c0_i32 = arith.constant 0 : i32
    %c0_i32_0 = arith.constant 0 : i32
    return %c0_i32, %arg0 : i32, i32
  }
}

</mosaic_0001>

<llo_original>
// kernel: _router_pallas.1
$region0: #{_router_pallas.1}
  #allocation0 [shape = 'u32[]', space=smem, size = 0x4, offset = 0x4, fixed_abs, tag = 'smem constant byte address 0x4 - core index']
  #allocation1 [shape = 'u32[144,128]{1,0:T(1,128)}', space=vmem, size = 0x12000, scoped, tag = 'internal scratch']
  #allocation2 [shape = 'f32[2,4]{1,0:T(2,128)}', space=vmem, size = 0x400, scoped, tag = 'scratch operand']
  %s0 = inlined_call_operand.hbm [shape: f32[2,1024], index: 0, kind: input, shape index: {}]
  %s1 = inlined_call_operand.hbm [shape: f32[4,1024], index: 1, kind: input, shape index: {}]
  %s2 = inlined_call_operand.hbm [shape: f32[2,4], index: 2, kind: output, shape index: {}]
  %s3 = sld [smem:[#allocation0]]
  $region57: #{_router_pallas.1} parent=0
    _
  %s5 = ssub.s32 1, %s3
  %s6 = scalar_select 0, %s5, %s3
  $region1: #{_router_pallas.1} parent=0
    #allocation3 [shape = 'u8[8192]{0}', space=vmem, size = 0x2000, scoped, tag = 'input window, operand 0']
    #allocation4 [shape = 's32[2]{0}', space=sflag, size = 0x8, scoped, tag = 'scoped memory for _router_pallas.1']
    #allocation5 [shape = 's32[2]{0}', space=sflag, size = 0x8, scoped, tag = 'scoped memory for _router_pallas.1']
    #allocation6 [shape = 'u8[16384]{0}', space=vmem, size = 0x4000, scoped, tag = 'input window, operand 1']
    #allocation7 [shape = 's32[2]{0}', space=sflag, size = 0x8, scoped, tag = 'scoped memory for _router_pallas.1']
    #allocation8 [shape = 'u8[1024]{0}', space=vmem, size = 0x400, scoped, tag = 'output window, operand 0, single buffered']
    %7 = vsyncpa [#allocation4], 0
    %s8 = scalar_lea.sflag [#allocation4], 1
    %9 = vsyncpa %s8, 0
    %10 = vsyncpa [#allocation7], 0
    %s11 = scalar_lea.sflag [#allocation7], 1
    %12 = vsyncpa %s11, 0
    %13 = vsyncpa [#allocation5], 0
    loop: start=0, step=1, limit=4
    $region2: #{_router_pallas.1} parent=1 // loop_pre_header
      _
    $region3: #{_router_pallas.1} parent=1 // loop_header
      %s15 = sphi 0, %s19
      %p16 = scmp.ge.s32.totalorder %s15, 4
      %s22 = sphi 0, %s34
      %s23 = sphi 0, %s30
      %s24 = sphi 0, %s22
      %s25 = sphi 0, %s23
      %s26 = sphi 0, %s24
      %s27 = sphi 0, %s25
      %s37 = sphi 0, %s39
      %s40 = sphi 0, %s37
      %s41 = sphi 0, %s40
      %s57 = sphi 0, %s41
      %s65 = sphi 0, %s67
      %s68 = sphi 0, %s65
      %s69 = sphi 0, %s68
      %s85 = sphi 0, %s69
      %s91 = sphi 0, %s93
      %s94 = sphi 0, %s91
      %s95 = sphi 0, %s94
      %s111 = sphi 0, %s95
    $region4: #{_router_pallas.1} parent=1 // loop_header_branch
      %18 = sbr.rel (%p16) target = $region8
    $region5: #{_router_pallas.1} parent=1 // loop_body
      %s20 = ssub.s32 %s15, 1
      %s21 = ssub.s32 %s15, 2
      %s28 = sadd.s32 1, %s23
      %p29 = scmp.ge.s32.totalorder %s28, 2
      %s30 = scalar_select %p29, 0, %s28
      %s31 = sadd.s32 1, %s22
      %s32 = scalar_select %p29, %s31, %s22
      %p33 = scmp.ge.s32.totalorder %s32, 1
      %s34 = scalar_select %p33, 0, %s32
      %s35 = ssub.s32 %s23, %s30
      %p36 = scmp.eq.s32.totalorder %s35, 0
      %s38 = sadd.s32 %s37, 1
      %s39 = scalar_select %p36, %s37, %s38
      %p42 = pneg %p36
      %p43 = scmp.eq.s32.totalorder %s15, 1
      %p44 = por %p42, %p43
      %p45 = scmp.ne.s32.totalorder %s37, %s40
      %p46 = scmp.eq.s32.totalorder %s15, 0
      %p47 = por %p45, %p46
      %p48 = scmp.ne.s32.totalorder %s37, %s40
      %p49 = scmp.eq.s32.totalorder %s20, 1
      %p50 = por %p48, %p49
      %p51 = scmp.ne.s32.totalorder %s40, %s41
      %p52 = scmp.eq.s32.totalorder %s20, 0
      %p53 = por %p51, %p52
      %p54 = scmp.ne.s32.totalorder %s40, %s41
      %p55 = scmp.eq.s32.totalorder %s21, 1
      %p56 = por %p54, %p55
      %p58 = scmp.ne.s32.totalorder %s41, %s57
      %p59 = scmp.eq.s32.totalorder %s21, 0
      %p60 = por %p58, %p59
      %s61 = ssub.s32 %s22, %s34
      %s62 = ssub.s32 %s23, %s30
      %s63 = sor.u32 %s61, %s62
      %p64 = scmp.eq.s32.totalorder %s63, 0
      %s66 = sadd.s32 %s65, 1
      %s67 = scalar_select %p64, %s65, %s66
      %p70 = pneg %p64
      %p71 = scmp.eq.s32.totalorder %s15, 1
      %p72 = por %p70, %p71
      %p73 = scmp.ne.s32.totalorder %s65, %s68
      %p74 = scmp.eq.s32.totalorder %s15, 0
      %p75 = por %p73, %p74
      %p76 = scmp.ne.s32.totalorder %s65, %s68
      %p77 = scmp.eq.s32.totalorder %s20, 1
      %p78 = por %p76, %p77
      %p79 = scmp.ne.s32.totalorder %s68, %s69
      %p80 = scmp.eq.s32.totalorder %s20, 0
      %p81 = por %p79, %p80
      %p82 = scmp.ne.s32.totalorder %s68, %s69
      %p83 = scmp.eq.s32.totalorder %s21, 1
      %p84 = por %p82, %p83
      %p86 = scmp.ne.s32.totalorder %s69, %s85
      %p87 = scmp.eq.s32.totalorder %s21, 0
      %p88 = por %p86, %p87
      %s89 = ssub.s32 %s22, %s34
      %p90 = scmp.eq.s32.totalorder %s89, 0
      %s92 = sadd.s32 %s91, 1
      %s93 = scalar_select %p90, %s91, %s92
      %p96 = pneg %p90
      %p97 = scmp.eq.s32.totalorder %s15, 1
      %p98 = por %p96, %p97
      %p99 = scmp.ne.s32.totalorder %s91, %s94
      %p100 = scmp.eq.s32.totalorder %s15, 0
      %p101 = por %p99, %p100
      %p102 = scmp.ne.s32.totalorder %s91, %s94
      %p103 = scmp.eq.s32.totalorder %s20, 1
      %p104 = por %p102, %p103
      %p105 = scmp.ne.s32.totalorder %s94, %s95
      %p106 = scmp.eq.s32.totalorder %s20, 0
      %p107 = por %p105, %p106
      %p108 = scmp.ne.s32.totalorder %s94, %s95
      %p109 = scmp.eq.s32.totalorder %s21, 1
      %p110 = por %p108, %p109
      %p112 = scmp.ne.s32.totalorder %s95, %s111
      %p113 = scmp.eq.s32.totalorder %s21, 0
      %p114 = por %p112, %p113
      %p115 = scmp.le.s32.totalorder 1, %s15
      %p116 = scmp.lt.s32.totalorder %s15, 3
      %p117 = pnand %p115, %p116
      %p118 = pneg %p117
      // Predicated region
      $region9: #{_router_pallas.1} parent=5 // pred_check
        _
      $region10: #{_router_pallas.1} parent=5 // pred_check_branch
        %120 = sbr.rel (%p117) target = $region12
      $region11: #{_router_pallas.1} parent=5 // pred_region
        %s121 = ssub.s32 %s15, 1
      $region12: #{_router_pallas.1} parent=5 // pred_fallthru
        _
      %p122 = scmp.lt.s32.totalorder %s15, 2
      // Predicated region
      $region13: #{_router_pallas.1} parent=5 // pred_check
        %p123 = pneg %p122
      $region14: #{_router_pallas.1} parent=5 // pred_check_branch
        %125 = sbr.rel (%p123) target = $region16
      $region15: #{_router_pallas.1} parent=5 // pred_region
        // Predicated region
        $region17: #{_router_pallas.1} parent=15 // pred_check
          %p126 = pneg %p47
        $region18: #{_router_pallas.1} parent=15 // pred_check_branch
          %128 = sbr.rel (%p126) target = $region20
        $region19: #{_router_pallas.1} parent=15 // pred_region
          %s129 = sand.u32 %s37, 1
          %s130 = scalar_lea.sflag [#allocation4], %s129
          %s131 = sand.u32 %s37, 1
          %s132 = smul.addr %s131, 8
          %s133 = scalar_lea.vmem [#allocation3], %s132
          %s134 = smul.u32 4, %s23
          %s136 = ssub.s32 128, 128
          %137 = vsyncadd %s130, %s136
          %s138 = smul.addr %s134, 32
          %s139 = scalar_lea.hbm %s0, %s138
          %s141 = sshll.u32 %s133, 4
          %s142 = int_to_ptr.vmem [resolvable:$true] %s141
          %144 = dma.hbm_to_vmem [thread:$0]  %s139, 128, %s142, %s130
        $region20: #{_router_pallas.1} parent=15 // pred_fallthru
          _
        // Predicated region
        $region21: #{_router_pallas.1} parent=15 // pred_check
          %p145 = pneg %p75
        $region22: #{_router_pallas.1} parent=15 // pred_check_branch
          %147 = sbr.rel (%p145) target = $region24
        $region23: #{_router_pallas.1} parent=15 // pred_region
          %s148 = sand.u32 %s65, 1
          %s149 = scalar_lea.sflag [#allocation7], %s148
          %s150 = sand.u32 %s65, 1
          %s151 = smul.addr %s150, 16
          %s152 = scalar_lea.vmem [#allocation6], %s151
          %s153 = smul.u32 4, %s23
          %s155 = ssub.s32 256, 256
          %156 = vsyncadd %s149, %s155
          %s157 = smul.addr %s22, 8
          %s158 = sadd.s32 %s153, %s157
          %s159 = smul.addr %s158, 64
          %s160 = scalar_lea.hbm %s1, %s159
          %s162 = sshll.u32 %s152, 4
          %s163 = int_to_ptr.vmem [resolvable:$true] %s162
          %165 = dma.hbm_to_vmem [thread:$0]  %s160, 256, %s163, %s149
        $region24: #{_router_pallas.1} parent=15 // pred_fallthru
          _
      $region16: #{_router_pallas.1} parent=5 // pred_fallthru
        _
      %p166 = scmp.le.s32.totalorder 1, %s15
      %p167 = scmp.lt.s32.totalorder %s15, 3
      %p168 = pnand %p166, %p167
      %p169 = pneg %p168
      // Predicated region
      $region25: #{_router_pallas.1} parent=5 // pred_check
        _
      $region26: #{_router_pallas.1} parent=5 // pred_check_branch
        %171 = sbr.rel (%p168) target = $region28
      $region27: #{_router_pallas.1} parent=5 // pred_region
        %s172 = ssub.s32 %s15, 1
        %s173 = sand.u32 %s40, 1
        %s174 = scalar_lea.sflag [#allocation4], %s173
        %s175 = sand.u32 %s40, 1
        %s176 = smul.addr %s175, 8
        %s177 = scalar_lea.vmem [#allocation3], %s176
        // Predicated region
        $region29: #{_router_pallas.1} parent=27 // pred_check
          %p178 = pneg %p53
        $region30: #{_router_pallas.1} parent=27 // pred_check_branch
          %180 = sbr.rel (%p178) target = $region32
        $region31: #{_router_pallas.1} parent=27 // pred_region
          %181 = dma.done %s174, 128
        $region32: #{_router_pallas.1} parent=27 // pred_fallthru
          _
        %s182 = sand.u32 %s68, 1
        %s183 = scalar_lea.sflag [#allocation7], %s182
        %s184 = sand.u32 %s68, 1
        %s185 = smul.addr %s184, 16
        %s186 = scalar_lea.vmem [#allocation6], %s185
        // Predicated region
        $region33: #{_router_pallas.1} parent=27 // pred_check
          %p187 = pneg %p81
        $region34: #{_router_pallas.1} parent=27 // pred_check_branch
          %189 = sbr.rel (%p187) target = $region36
        $region35: #{_router_pallas.1} parent=27 // pred_region
          %190 = dma.done %s183, 256
        $region36: #{_router_pallas.1} parent=27 // pred_fallthru
          _
        %s191 = sand.u32 %s40, 1
        %s192 = scalar_lea.sflag [#allocation4], %s191
        %s193 = sand.u32 %s40, 1
        %s194 = smul.addr %s193, 8
        %s195 = scalar_lea.vmem [#allocation3], %s194
        %p196 = pneg %p53
        %p197 = pneg %p50
        %s198 = sand.u32 %s68, 1
        %s199 = scalar_lea.sflag [#allocation7], %s198
        %s200 = sand.u32 %s68, 1
        %s201 = smul.addr %s200, 16
        %s202 = scalar_lea.vmem [#allocation6], %s201
        %p203 = pneg %p81
        %p204 = pneg %p78
        %p205 = pneg %p107
        %p206 = pneg %p104
        %s207 = smul.u32 4, %s25
        %s208 = smul.u32 4, %s25
        %p209 = scmp.eq.s32.totalorder %s25, 0
        // Predicated region
        $region37: #{_router_pallas.1} parent=27 // pred_check
          %p210 = pneg %p209
        $region38: #{_router_pallas.1} parent=27 // pred_check_branch
          %212 = sbr.rel (%p210) target = $region40
        $region39: #{_router_pallas.1} parent=27 // pred_region
          %vm213 = vcmask 25600
          %214 = vst.msk [vmem:[#allocation2] sm:$0x3] %vm213, 0.0
        $region40: #{_router_pallas.1} parent=27 // pred_fallthru
          _
        %v215 = vld [vmem:[#allocation2] sm:$0x3]
        %v216 = vld [vmem:[%s177] sm:$0xff]
        %v217 = vld [vmem:[%s186] sm:$0xff]
        %v218 = vld [vmem:[%s186 + $0x8] sm:$0xff]
        %v220 = vcombine.high %v216, %v216
        %v222 = vunpack.c.l.s4 1983009808
        %v223 = vunpack.c.0.s8 %v222
        %v224 = vlaneseq
        %v225 = vshrl.u32 %v224, 7
        %v226 = vsub.s32 %v223, %v225
        %v227 = vrot.slane %v216, %v226
        %v229 = vunpack.c.l.s4 1983009808
        %v230 = vunpack.c.0.s8 %v229
        %v231 = vlaneseq
        %v232 = vshrl.u32 %v231, 7
        %v233 = vsub.s32 %v230, %v232
        %v234 = vrot.slane %v220, %v233
        %v235 = vcombine.high %v227, %v227
        %v236 = vcombine.high %v234, %v234
        %v243 = vcombine.high %v217, %v217
        %v244 = vcombine.high %v218, %v218
        %247 = vmatprep.subr.mxu0 0.0
        %248 = vmatpush1.xpose.msra.mxu0 0.0
        %249 = vmatprep.subr.mxu0 0.0
        %250 = vmatpush1.xpose.msra.mxu0 0.0
        %251 = vmatprep.subr.mxu0 0.0
        %252 = vmatpush1.xpose.msra.mxu0 0.0
        %253 = vmatprep.subr.mxu0 0.0
        %254 = vmatpush1.xpose.msra.mxu0 0.0
        %255 = vmatprep.subr.mxu0 0.0
        %256 = vmatpush1.xpose.msra.mxu0 0.0
        %257 = vmatprep.subr.mxu0 0.0
        %258 = vmatpush1.xpose.msra.mxu0 0.0
        %259 = vmatprep.subr.mxu0 0.0
        %260 = vmatpush1.xpose.msra.mxu0 0.0
        %261 = vmatprep.subr.mxu0 0.0
        %262 = vmatpush1.xpose.msra.mxu0 0.0
        %263 = vmatprep.subr.mxu0 0.0
        %264 = vmatpush1.xpose.msra.mxu0 0.0
        %265 = vmatprep.subr.mxu0 0.0
        %266 = vmatpush1.xpose.msra.mxu0 0.0
        %267 = vmatprep.subr.mxu0 0.0
        %268 = vmatpush1.xpose.msra.mxu0 0.0
        %269 = vmatprep.subr.mxu0 0.0
        %270 = vmatpush1.xpose.msra.mxu0 0.0
        %271 = vmatprep.subr.mxu0 0.0
        %272 = vmatpush1.xpose.msra.mxu0 0.0
        %273 = vmatprep.subr.mxu0 0.0
        %274 = vmatpush1.xpose.msra.mxu0 0.0
        %275 = vmatprep.subr.mxu0 0.0
        %276 = vmatpush1.xpose.msra.mxu0 0.0
        %277 = vmatprep.subr.mxu0 %v243
        %278 = vmatpush1.xpose.msra.mxu0 %v217
        %279 = vmatprep.subr.mxu0 0.0
        %280 = vmatpush2.xpose.msra.mxu0 0.0
        %281 = vmatprep.subr.mxu0 0.0
        %282 = vmatpush2.xpose.msra.mxu0 0.0
        %283 = vmatprep.subr.mxu0 0.0
        %284 = vmatpush2.xpose.msra.mxu0 0.0
        %285 = vmatprep.subr.mxu0 0.0
        %286 = vmatpush2.xpose.msra.mxu0 0.0
        %287 = vmatprep.subr.mxu0 0.0
        %288 = vmatpush2.xpose.msra.mxu0 0.0
        %289 = vmatprep.subr.mxu0 0.0
        %290 = vmatpush2.xpose.msra.mxu0 0.0
        %291 = vmatprep.subr.mxu0 0.0
        %292 = vmatpush2.xpose.msra.mxu0 0.0
        %293 = vmatprep.subr.mxu0 0.0
        %294 = vmatpush2.xpose.msra.mxu0 0.0
        %295 = vmatprep.subr.mxu0 0.0
        %296 = vmatpush2.xpose.msra.mxu0 0.0
        %297 = vmatprep.subr.mxu0 0.0
        %298 = vmatpush2.xpose.msra.mxu0 0.0
        %299 = vmatprep.subr.mxu0 0.0
        %300 = vmatpush2.xpose.msra.mxu0 0.0
        %301 = vmatprep.subr.mxu0 0.0
        %302 = vmatpush2.xpose.msra.mxu0 0.0
        %303 = vmatprep.subr.mxu0 0.0
        %304 = vmatpush2.xpose.msra.mxu0 0.0
        %305 = vmatprep.subr.mxu0 0.0
        %306 = vmatpush2.xpose.msra.mxu0 0.0
        %307 = vmatprep.subr.mxu0 0.0
        %308 = vmatpush2.xpose.msra.mxu0 0.0
        %309 = vmatprep.subr.mxu0 0.0
        %310 = vmatpush2.xpose.msra.mxu0 0.0
        %311 = vmatprep.mubr.f32.mxu0 %v235
        %312 = vmatmul.mubr.f32.gmra.mxu0 %v227
        %v313 = vpop.f32.mrf.mxu0
        %v314 = vadd.f32 0.0, %v313
        %v315 = vpop.f32.mrf.mxu0
        %316 = vdwg.mxu0
        %317 = vmatprep.subr.mxu0 0.0
        %318 = vmatpush1.xpose.msra.mxu0 0.0
        %319 = vmatprep.subr.mxu0 0.0
        %320 = vmatpush1.xpose.msra.mxu0 0.0
        %321 = vmatprep.subr.mxu0 0.0
        %322 = vmatpush1.xpose.msra.mxu0 0.0
        %323 = vmatprep.subr.mxu0 0.0
        %324 = vmatpush1.xpose.msra.mxu0 0.0
        %325 = vmatprep.subr.mxu0 0.0
        %326 = vmatpush1.xpose.msra.mxu0 0.0
        %327 = vmatprep.subr.mxu0 0.0
        %328 = vmatpush1.xpose.msra.mxu0 0.0
        %329 = vmatprep.subr.mxu0 0.0
        %330 = vmatpush1.xpose.msra.mxu0 0.0
        %331 = vmatprep.subr.mxu0 0.0
        %332 = vmatpush1.xpose.msra.mxu0 0.0
        %333 = vmatprep.subr.mxu0 0.0
        %334 = vmatpush1.xpose.msra.mxu0 0.0
        %335 = vmatprep.subr.mxu0 0.0
        %336 = vmatpush1.xpose.msra.mxu0 0.0
        %337 = vmatprep.subr.mxu0 0.0
        %338 = vmatpush1.xpose.msra.mxu0 0.0
        %339 = vmatprep.subr.mxu0 0.0
        %340 = vmatpush1.xpose.msra.mxu0 0.0
        %341 = vmatprep.subr.mxu0 0.0
        %342 = vmatpush1.xpose.msra.mxu0 0.0
        %343 = vmatprep.subr.mxu0 0.0
        %344 = vmatpush1.xpose.msra.mxu0 0.0
        %345 = vmatprep.subr.mxu0 0.0
        %346 = vmatpush1.xpose.msra.mxu0 0.0
        %347 = vmatprep.subr.mxu0 %v244
        %348 = vmatpush1.xpose.msra.mxu0 %v218
        %349 = vmatprep.subr.mxu0 0.0
        %350 = vmatpush2.xpose.msra.mxu0 0.0
        %351 = vmatprep.subr.mxu0 0.0
        %352 = vmatpush2.xpose.msra.mxu0 0.0
        %353 = vmatprep.subr.mxu0 0.0
        %354 = vmatpush2.xpose.msra.mxu0 0.0
        %355 = vmatprep.subr.mxu0 0.0
        %356 = vmatpush2.xpose.msra.mxu0 0.0
        %357 = vmatprep.subr.mxu0 0.0
        %358 = vmatpush2.xpose.msra.mxu0 0.0
        %359 = vmatprep.subr.mxu0 0.0
        %360 = vmatpush2.xpose.msra.mxu0 0.0
        %361 = vmatprep.subr.mxu0 0.0
        %362 = vmatpush2.xpose.msra.mxu0 0.0
        %363 = vmatprep.subr.mxu0 0.0
        %364 = vmatpush2.xpose.msra.mxu0 0.0
        %365 = vmatprep.subr.mxu0 0.0
        %366 = vmatpush2.xpose.msra.mxu0 0.0
        %367 = vmatprep.subr.mxu0 0.0
        %368 = vmatpush2.xpose.msra.mxu0 0.0
        %369 = vmatprep.subr.mxu0 0.0
        %370 = vmatpush2.xpose.msra.mxu0 0.0
        %371 = vmatprep.subr.mxu0 0.0
        %372 = vmatpush2.xpose.msra.mxu0 0.0
        %373 = vmatprep.subr.mxu0 0.0
        %374 = vmatpush2.xpose.msra.mxu0 0.0
        %375 = vmatprep.subr.mxu0 0.0
        %376 = vmatpush2.xpose.msra.mxu0 0.0
        %377 = vmatprep.subr.mxu0 0.0
        %378 = vmatpush2.xpose.msra.mxu0 0.0
        %379 = vmatprep.subr.mxu0 0.0
        %380 = vmatpush2.xpose.msra.mxu0 0.0
        %381 = vmatprep.mubr.f32.mxu0 %v236
        %382 = vmatmul.mubr.f32.gmra.mxu0 %v234
        %v383 = vpop.f32.mrf.mxu0
        %v384 = vadd.f32 %v314, %v383
        %v385 = vpop.f32.mrf.mxu0
        %386 = vdwg.mxu0
        %v387 = vadd.f32 %v215, %v384
        %vm388 = vcmask 25600
        %389 = vst.msk [vmem:[#allocation2] sm:$0x3] %vm388, %v387
        %p390 = scmp.eq.s32.totalorder %s25, 1
        // Predicated region
        $region41: #{_router_pallas.1} parent=27 // pred_check
          %p391 = pneg %p390
        $region42: #{_router_pallas.1} parent=27 // pred_check_branch
          %393 = sbr.rel (%p391) target = $region44
        $region43: #{_router_pallas.1} parent=27 // pred_region
          %v394 = vld [vmem:[#allocation2] sm:$0x3]
          %v395 = vsel %vm388, %v394, 0.0
          %v396 = vrot.slane %v395, 4
          %v397 = vadd.f32 %v395, %v396
          %v398 = vrot.slane %v397, 2
          %v399 = vadd.f32 %v397, %v398
          %v400 = vrot.slane %v399, 1
          %v401 = vadd.f32 %v399, %v400
          %v402 = vrcp.pop 2.0
          %v403 = vmul.f32 %v401, %v402
          %v404 = vsub.f32 %v394, %v403
          %v405 = vmul.f32 %v404, %v404
          %v406 = vsel %vm388, %v405, 0.0
          %v407 = vrot.slane %v406, 4
          %v408 = vadd.f32 %v406, %v407
          %v409 = vrot.slane %v408, 2
          %v410 = vadd.f32 %v408, %v409
          %v411 = vrot.slane %v410, 1
          %v412 = vadd.f32 %v410, %v411
          %v413 = vmul.f32 %v412, %v402
          %v414 = vadd.f32 %v413, 1e-05
          %v415 = vrsqrt.pop %v414
          %v416 = vmul.f32 %v404, %v415
          %417 = vst.msk [vmem:[#allocation8] sm:$0x3] %vm388, %v416
        $region44: #{_router_pallas.1} parent=27 // pred_fallthru
          _
        // Predicated region
        $region45: #{_router_pallas.1} parent=27 // pred_check
          %p418 = pneg %p104
        $region46: #{_router_pallas.1} parent=27 // pred_check_branch
          %420 = sbr.rel (%p418) target = $region48
        $region47: #{_router_pallas.1} parent=27 // pred_region
          %s422 = ssub.s32 32, 32
          %423 = vsyncadd [#allocation5], %s422
          %s424 = smul.addr %s24, 32
          %s425 = scalar_lea.hbm %s2, %s424
          %s427 = sshll.u32 [#allocation8], 4
          %s428 = int_to_ptr.vmem [resolvable:$true] %s427
          %430 = dma.vmem_to_hbm [thread:$0]  %s428, 32, %s425, [#allocation5]
        $region48: #{_router_pallas.1} parent=27 // pred_fallthru
          _
        // Predicated region
        $region49: #{_router_pallas.1} parent=27 // pred_check
          %p431 = pneg %p104
        $region50: #{_router_pallas.1} parent=27 // pred_check_branch
          %433 = sbr.rel (%p431) target = $region52
        $region51: #{_router_pallas.1} parent=27 // pred_region
          %434 = dma.done [#allocation5], 32
        $region52: #{_router_pallas.1} parent=27 // pred_fallthru
          _
      $region28: #{_router_pallas.1} parent=5 // pred_fallthru
        _
      %p435 = scmp.le.s32.totalorder 2, %s15
      // Predicated region
      $region53: #{_router_pallas.1} parent=5 // pred_check
        %p436 = pneg %p435
      $region54: #{_router_pallas.1} parent=5 // pred_check_branch
        %438 = sbr.rel (%p436) target = $region56
      $region55: #{_router_pallas.1} parent=5 // pred_region
        %s439 = ssub.s32 %s15, 2
      $region56: #{_router_pallas.1} parent=5 // pred_fallthru
        _
    $region6: #{_router_pallas.1} parent=1 // loop_footer
      %s19 = sadd.s32 1, %s15
    $region7: #{_router_pallas.1} parent=1 // loop_footer_branch
      %14 = sbr.rel target = $region3
    $region8: #{_router_pallas.1} parent=1 // loop_exit
      _
    %440 = vsyncpa [#allocation4], 1
    %s441 = scalar_lea.sflag [#allocation4], 1
    %442 = vsyncpa %s441, 1
    %443 = vsyncpa [#allocation7], 1
    %s444 = scalar_lea.sflag [#allocation7], 1
    %445 = vsyncpa %s444, 1
    %446 = vsyncpa [#allocation5], 1
    %s447 = scalar_lea.sflag [#allocation5], 1
    %448 = vsyncpa %s447, 1

</llo_original>
